<compile_context>
chip_gen: v6e
topology: v6e:2x2x1
jax: 0.10.0
libtpu: 0.0.40
codegen_flags: <defaults>
</compile_context>

<pallas_src>
import functools
import math

import jax
import jax.numpy as jnp
from jax import lax
from jax.experimental import pallas as pl
from jax.experimental.pallas import tpu as pltpu


_LANE_CHUNK = 1024                      # lanes per grouped im2col store
_VMEM_BUDGET = 32 * 1024 * 1024         # target per-step VMEM footprint
_VMEM_LIMIT_CAP = 48 * 1024 * 1024      # legal on v5e/v6e/v7x


# ---------------- Pallas kernel: one (batch, H-tile) grid step ----------------
def _conv2d_im2col_kernel(w_ref, b_ref, x_ref, o_ref, xcol_ref, *,
                          cin, cout, k, dil, wp, n_t, groups):
    # w_ref   : VMEM (Cout, K*K*Cin_g)   weights, column order (ky, kx, ci)
    # b_ref   : VMEM (Cout, 1)           bias (f32)
    # x_ref   : VMEM (1, 1, Cin, Lblk)   flat padded image slab (tile + halo)
    # o_ref   : VMEM (1, 1, Cout, TH*Wp) lane-dense output slab
    # xcol_ref: VMEM (K*K*Cin_g, TH*Wp)  im2col scratch, input dtype
    cin_g = cin // groups
    cout_g = cout // groups
    taps = k * k
    taps_per_store = max(1, 8 // cin_g)     # group stores to 8-sublane blocks
    for g in range(groups):
        c0 = g * cin_g
        # ---- pack: every tap is one lane-shifted STATIC slice of the flat
        # slab.  Taps are packed in groups so each store writes a full
        # 8-sublane row block (one unmasked vst per lane tile at Cin_g=2).
        for t0 in range(0, taps, taps_per_store):
            t1 = min(t0 + taps_per_store, taps)
            row0 = t0 * cin_g
            nrows = (t1 - t0) * cin_g
            for s in range(0, n_t, _LANE_CHUNK):           # static lane chunks
                e = min(s + _LANE_CHUNK, n_t)
                parts = []
                for tap in range(t0, t1):
                    ky, kx = divmod(tap, k)
                    off = (ky * wp + kx) * dil              # static lane offset
                    parts.append(x_ref[0, 0, c0:c0 + cin_g, off + s:off + e])
                val = parts[0] if len(parts) == 1 else jnp.concatenate(parts, 0)
                xcol_ref[row0:row0 + nrows, s:e] = val
        # ---- one MXU matmul covers every tap / output channel of the group.
        acc = jnp.dot(w_ref[g * cout_g:(g + 1) * cout_g, :], xcol_ref[...],
                      preferred_element_type=jnp.float32)
        acc = acc + b_ref[g * cout_g:(g + 1) * cout_g, :]   # single bias add
        o_ref[0, 0, g * cout_g:(g + 1) * cout_g, :] = acc.astype(o_ref.dtype)


# ---------------- wrapper-side padding (layout glue, plain JAX) ---------------
def _fourier_pad_flat(x, pad, rows_total):
    """Fourier-pad x = (B, 2, H, W) and return the flat lane-dense slab
    (B, 2, rows_total * Wp), Wp = W + pad.  Rows beyond H + pad are filler
    (H-tile halo of the last tile + flat-layout lane tail) that legitimate
    conv outputs never read; they are folded into the single H reflect pad."""
    B, C, H, W = x.shape
    if C != 2:
        raise ValueError("Conv2d_fourier expects exactly 2 channels (real, imag)")
    if pad % 2 != 0:
        raise ValueError("cannot do centered padding if padding is not even")
    p = pad // 2
    if p > H - 1 or p > W - 1:
        raise ValueError("reflect padding requires padding//2 <= spatial_dim-1")
    real, imag = x[:, 0:1], x[:, 1:2]
    # W axis: reflect (real) / anti-reflect (imag) = reflect(-x) + 2*zero_pad(x)
    real = jnp.pad(real, ((0, 0), (0, 0), (0, 0), (p, p)), mode="reflect")
    imag = (jnp.pad(-imag, ((0, 0), (0, 0), (0, 0), (p, p)), mode="reflect")
            + 2.0 * jnp.pad(imag, ((0, 0), (0, 0), (0, 0), (p, p))))
    xw = jnp.concatenate([real, imag], axis=1)              # (B, 2, H, Wp)
    # H axis: reflect both channels (axis-wise pads commute with the W pads).
    # Bottom is extended by the filler rows in the SAME pad op.
    bot = rows_total - H - p
    if bot <= H - 1:
        xh = jnp.pad(xw, ((0, 0), (0, 0), (p, bot), (0, 0)), mode="reflect")
    else:
        xh = jnp.pad(xw, ((0, 0), (0, 0), (p, p), (0, 0)), mode="reflect")
        xh = jnp.pad(xh, ((0, 0), (0, 0), (0, bot - p), (0, 0)))
    return xh.reshape(B, 2, rows_total * (W + pad))


# ---------------- full forward: pad + conv -----------------------------------
def conv2d_fourier_pallas(x, weight, bias=None, *, dilation=1, groups=1,
                          tile_rows=None):
    """Conv2d_fourier forward: fourier pad + valid conv, stride=1, NCHW."""
    B, Cin, H, W = x.shape
    Cout, Cin_g, K, K2 = weight.shape
    assert K == K2
    if Cin % groups or Cout % groups or Cin_g != Cin // groups:
        raise ValueError("bad channel / group configuration")
    pad = (K - 1) * dilation
    Ho, Wo = H, W                                   # valid conv restores H, W
    Wp = W + pad
    cout_g = Cout // groups
    R = K * K * Cin_g
    in_bytes = x.dtype.itemsize

    # --- per-step VMEM estimate -> pick the H tile size TH -------------------
    def vmem_estimate(th):
        lblk = (th + pad) * Wp + pad
        nt = th * Wp
        b = 2 * Cin * lblk * in_bytes               # double-buffered input slab
        b += 2 * Cout * nt * in_bytes               # double-buffered output slab
        b += R * nt * in_bytes                      # im2col scratch
        b += cout_g * nt * 4                        # f32 matmul / bias temp
        b += 2 * (Cout * R + Cout) * 4              # weights + bias
        return b

    if tile_rows is None:
        th = min(Ho, 256)
        while th > 1 and vmem_estimate(th) > _VMEM_BUDGET:
            th = max(1, th // 2)
        # v7x: make sure both TensorCores get grid work even at B == 1.
        if B * pl.cdiv(Ho, th) < 2 and Ho > 1:
            th = pl.cdiv(Ho, 2)
    else:
        th = max(1, min(int(tile_rows), Ho))
    num_tiles = pl.cdiv(Ho, th)
    Lblk = (th + pad) * Wp + pad                    # tile rows + halo + lane tail
    N_t = th * Wp                                   # lane-dense slab per tile

    # --- padding + flat layout + overlapping H tiles (wrapper glue) ----------
    rows_total = num_tiles * th + pad + (1 if pad > 0 else 0)
    x_flat = _fourier_pad_flat(x, pad, rows_total)  # (B, Cin, rows_total*Wp)
    x_tiles = jnp.stack([x_flat[:, :, t * th * Wp: t * th * Wp + Lblk]
                         for t in range(num_tiles)], axis=1)  # (B,T,Cin,Lblk)

    # (Cout, Cin_g, K, K) -> (Cout, K*K*Cin_g), column order (ky, kx, ci),
    # matching the im2col row order built in the kernel.
    w_mat = jnp.transpose(weight, (0, 2, 3, 1)).reshape(Cout, R).astype(x.dtype)
    if bias is None:
        bias = jnp.zeros((Cout,), jnp.float32)
    b_vec = bias.reshape(Cout, 1).astype(jnp.float32)

    kernel = functools.partial(_conv2d_im2col_kernel, cin=Cin, cout=Cout, k=K,
                               dil=dilation, wp=Wp, n_t=N_t, groups=groups)

    est = vmem_estimate(th)
    vmem_limit = int(min(max(est * 3 // 2, 32 * 1024 * 1024), _VMEM_LIMIT_CAP))

    out_tiles = pl.pallas_call(
        kernel,
        out_shape=jax.ShapeDtypeStruct((B, num_tiles, Cout, N_t), x.dtype),
        grid=(B, num_tiles),
        in_specs=[
            pl.BlockSpec((Cout, R), lambda b, t: (0, 0)),             # weights
            pl.BlockSpec((Cout, 1), lambda b, t: (0, 0)),             # bias
            pl.BlockSpec((1, 1, Cin, Lblk), lambda b, t: (b, t, 0, 0)),  # image
        ],
        out_specs=pl.BlockSpec((1, 1, Cout, N_t), lambda b, t: (b, t, 0, 0)),
        scratch_shapes=[pltpu.VMEM((R, N_t), x.dtype)],
        compiler_params=pltpu.CompilerParams(
            dimension_semantics=("parallel", "parallel"),
            vmem_limit_bytes=vmem_limit),
    )(w_mat, b_vec, x_tiles)

    # Drop the garbage columns / rows created by the flat + tiled layout.
    # TODO(synk): skip this copy when the consumer accepts the lane-dense slab.
    out = out_tiles.reshape(B, num_tiles, Cout, th, Wp)
    out = jnp.moveaxis(out, 1, 2).reshape(B, Cout, num_tiles * th, Wp)
    return out[:, :, :Ho, :Wo]


# ---------------- module-equivalent wrapper ----------------------------------
class Conv2dFourierPallas:
    def __init__(self, in_channels, out_channels, kernel_size, stride=1,
                 dilation=1, groups=1, bias=True, *, key):
        if stride != 1:
            # TODO(synk): stride > 1 needs strided output windowing in-kernel.
            raise NotImplementedError("stride must be 1")
        if in_channels != 2:
            raise ValueError("Conv2d_fourier requires in_channels == 2")
        if in_channels % groups or out_channels % groups:
            raise ValueError("channels must be divisible by groups")
        self.kernel_size = kernel_size
        self.dilation = dilation
        self.groups = groups
        kw, kb = jax.random.split(key)
        fan_in = (in_channels // groups) * kernel_size * kernel_size
        bound = 1.0 / math.sqrt(fan_in)
        # deterministic init (mimics torch Conv2d uniform bound; not a checkpoint)
        self.weight = jax.random.uniform(
            kw, (out_channels, in_channels // groups, kernel_size, kernel_size),
            jnp.float32, -bound, bound)
        self.bias = (jax.random.uniform(kb, (out_channels,), jnp.float32,
                                        -bound, bound)
                     if bias else jnp.zeros((out_channels,), jnp.float32))

    def __call__(self, x, *, tile_rows=None):
        return conv2d_fourier_pallas(x, self.weight, self.bias,
                                     dilation=self.dilation, groups=self.groups,
                                     tile_rows=tile_rows)


# ---------------- pure-JAX reference of the same forward ---------------------
def pad2d_fourier(x, padding):
    pad_y, pad_x = padding
    if pad_y % 2 or pad_x % 2:
        raise ValueError("cannot do centered padding if padding is not even")
    py, px = pad_y // 2, pad_x // 2
    real, imag = x[:, 0:1], x[:, 1:2]
    real = jnp.pad(real, ((0, 0), (0, 0), (py, py), (0, 0)), mode="reflect")
    imag = jnp.pad(imag, ((0, 0), (0, 0), (py, py), (0, 0)), mode="reflect")
    real = jnp.pad(real, ((0, 0), (0, 0), (0, 0), (px, px)), mode="reflect")
    imag = (jnp.pad(-imag, ((0, 0), (0, 0), (0, 0), (px, px)), mode="reflect")
            + 2.0 * jnp.pad(imag, ((0, 0), (0, 0), (0, 0), (px, px))))
    return jnp.concatenate([real, imag], axis=1)


def _reference_forward(x, weight, bias, kernel_size, dilation, groups):
    pad = (kernel_size - 1) * dilation
    x_pad = pad2d_fourier(x, (pad, pad))
    out = lax.conv_general_dilated(
        x_pad, weight, window_strides=(1, 1), padding="VALID",
        rhs_dilation=(dilation, dilation),
        dimension_numbers=("NCHW", "OIHW", "NCHW"),
        feature_group_count=groups, precision=lax.Precision.HIGHEST)
    return out + bias[None, :, None, None]


if __name__ == "__main__":
    key = jax.random.PRNGKey(0)
    k_x, k1, k2, k3, k4 = jax.random.split(key, 5)

    def _quant(v, scale):
        # Snap values onto a bf16-exact grid so any MXU operand rounding inside
        # the kernel / reference cannot perturb the comparison.
        return jnp.round(v * scale) / scale

    def _check(out, ref):
        assert out.shape == ref.shape, (out.shape, ref.shape)
        err = float(jnp.max(jnp.abs(out - ref)))
        assert err < 1e-4, err

    B, H, W = 2, 16, 16
    x = _quant(jax.random.normal(k_x, (B, 2, H, W), jnp.float32), 32.0)

    # Case 1: standard (in=2, out=4, k=3, dilation=1, groups=1).
    mod = Conv2dFourierPallas(2, 4, 3, key=k1)
    mod.weight = _quant(mod.weight, 256.0)
    mod.bias = _quant(mod.bias, 256.0)
    out = jax.block_until_ready(mod(x))
    assert out.shape == (B, 4, H, W)
    _check(out, _reference_forward(x, mod.weight, mod.bias, 3, 1, 1))

    # Case 2: dilation=2.
    mod2 = Conv2dFourierPallas(2, 4, 3, dilation=2, key=k2)
    mod2.weight = _quant(mod2.weight, 256.0)
    mod2.bias = _quant(mod2.bias, 256.0)
    _check(jax.block_until_ready(mod2(x)),
           _reference_forward(x, mod2.weight, mod2.bias, 3, 2, 1))

    # Case 3: groups=2 + forced H-tiling with a partial last tile
    #         (H=W=20, TH=8 -> 3 tiles, Wp not a multiple of 128).
    x3 = _quant(jax.random.normal(k3, (B, 2, 20, 20), jnp.float32), 32.0)
    mod3 = Conv2dFourierPallas(2, 4, 3, groups=2, key=k3)
    mod3.weight = _quant(mod3.weight, 256.0)
    mod3.bias = _quant(mod3.bias, 256.0)
    out3 = jax.block_until_ready(
        conv2d_fourier_pallas(x3, mod3.weight, mod3.bias, dilation=1, groups=2,
                              tile_rows=8))
    _check(out3, _reference_forward(x3, mod3.weight, mod3.bias, 3, 1, 2))

    # Case 4: B=1 (H axis auto-splits into >= 2 tiles so both v7x TCs get work).
    x4 = _quant(jax.random.normal(k4, (1, 2, 16, 16), jnp.float32), 32.0)
    out4 = jax.block_until_ready(mod(x4))
    _check(out4, _reference_forward(x4, mod.weight, mod.bias, 3, 1, 1))

    print("KERNEL_OK")
</pallas_src>

<mosaic_0001>
module attributes {stable_mosaic.version = 11 : i64} {
  func.func @_conv2d_im2col_kernel(%arg0: i32, %arg1: i32, %arg2: memref<4x18xf32, #tpu.memory_space<vmem>>, %arg3: memref<4x1xf32, #tpu.memory_space<vmem>>, %arg4: memref<1x1x2x326xf32, #tpu.memory_space<vmem>>, %arg5: memref<1x1x4x288xf32, #tpu.memory_space<vmem>>, %arg6: memref<18x288xf32, #tpu.memory_space<vmem>>) attributes {dimension_semantics = [#tpu.dimension_semantics<parallel>, #tpu.dimension_semantics<parallel>], iteration_bounds = array<i64: 2, 1>, scalar_prefetch = 0 : i64, scratch_operands = 1 : i64, tpu.core_type = #tpu.core_type<tc>, window_params = [{pipeline_mode = #tpu.pipeline_mode<synchronous>, transform_indices = @transform_0, window_bounds = array<i64: 4, 18>}, {pipeline_mode = #tpu.pipeline_mode<synchronous>, transform_indices = @transform_1, window_bounds = array<i64: 4, 1>}, {transform_indices = @transform_2, window_bounds = array<i64: 1, 1, 2, 326>}, {transform_indices = @transform_3, window_bounds = array<i64: 1, 1, 4, 288>}]} {
    %c0 = arith.constant 0 : index
    %c0_0 = arith.constant 0 : index
    %c0_1 = arith.constant 0 : index
    %c0_2 = arith.constant 0 : index
    %0 = vector.load %arg4[%c0, %c0_0, %c0_1, %c0_2] : memref<1x1x2x326xf32, #tpu.memory_space<vmem>>, vector<1x1x2x288xf32>
    %1 = vector.shape_cast %0 : vector<1x1x2x288xf32> to vector<2x288xf32>
    %c0_3 = arith.constant 0 : index
    %c0_4 = arith.constant 0 : index
    %c0_5 = arith.constant 0 : index
    %c1 = arith.constant 1 : index
    %2 = vector.load %arg4[%c0_3, %c0_4, %c0_5, %c1] : memref<1x1x2x326xf32, #tpu.memory_space<vmem>>, vector<1x1x2x288xf32>
    %3 = vector.shape_cast %2 : vector<1x1x2x288xf32> to vector<2x288xf32>
    %c0_6 = arith.constant 0 : index
    %c0_7 = arith.constant 0 : index
    %c0_8 = arith.constant 0 : index
    %c2 = arith.constant 2 : index
    %4 = vector.load %arg4[%c0_6, %c0_7, %c0_8, %c2] : memref<1x1x2x326xf32, #tpu.memory_space<vmem>>, vector<1x1x2x288xf32>
    %5 = vector.shape_cast %4 : vector<1x1x2x288xf32> to vector<2x288xf32>
    %c0_9 = arith.constant 0 : index
    %c0_10 = arith.constant 0 : index
    %c0_11 = arith.constant 0 : index
    %c18 = arith.constant 18 : index
    %6 = vector.load %arg4[%c0_9, %c0_10, %c0_11, %c18] : memref<1x1x2x326xf32, #tpu.memory_space<vmem>>, vector<1x1x2x288xf32>
    %7 = vector.shape_cast %6 : vector<1x1x2x288xf32> to vector<2x288xf32>
    %8 = tpu.concatenate %1, %3, %5, %7 in 0 : vector<2x288xf32>, vector<2x288xf32>, vector<2x288xf32>, vector<2x288xf32> -> vector<8x288xf32>
    %c0_12 = arith.constant 0 : index
    %c0_13 = arith.constant 0 : index
    %9 = vector.load %arg6[%c0_12, %c0_13] : memref<18x288xf32, #tpu.memory_space<vmem>>, vector<8x288xf32>
    tpu.vector_store %arg6[%c0_12, %c0_13], %8 {strides = array<i32>} : memref<18x288xf32, #tpu.memory_space<vmem>>, vector<8x288xf32>,
    %c0_14 = arith.constant 0 : index
    %c0_15 = arith.constant 0 : index
    %c0_16 = arith.constant 0 : index
    %c19 = arith.constant 19 : index
    %10 = vector.load %arg4[%c0_14, %c0_15, %c0_16, %c19] : memref<1x1x2x326xf32, #tpu.memory_space<vmem>>, vector<1x1x2x288xf32>
    %11 = vector.shape_cast %10 : vector<1x1x2x288xf32> to vector<2x288xf32>
    %c0_17 = arith.constant 0 : index
    %c0_18 = arith.constant 0 : index
    %c0_19 = arith.constant 0 : index
    %c20 = arith.constant 20 : index
    %12 = vector.load %arg4[%c0_17, %c0_18, %c0_19, %c20] : memref<1x1x2x326xf32, #tpu.memory_space<vmem>>, vector<1x1x2x288xf32>
    %13 = vector.shape_cast %12 : vector<1x1x2x288xf32> to vector<2x288xf32>
    %c0_20 = arith.constant 0 : index
    %c0_21 = arith.constant 0 : index
    %c0_22 = arith.constant 0 : index
    %c36 = arith.constant 36 : index
    %14 = vector.load %arg4[%c0_20, %c0_21, %c0_22, %c36] : memref<1x1x2x326xf32, #tpu.memory_space<vmem>>, vector<1x1x2x288xf32>
    %15 = vector.shape_cast %14 : vector<1x1x2x288xf32> to vector<2x288xf32>
    %c0_23 = arith.constant 0 : index
    %c0_24 = arith.constant 0 : index
    %c0_25 = arith.constant 0 : index
    %c37 = arith.constant 37 : index
    %16 = vector.load %arg4[%c0_23, %c0_24, %c0_25, %c37] : memref<1x1x2x326xf32, #tpu.memory_space<vmem>>, vector<1x1x2x288xf32>
    %17 = vector.shape_cast %16 : vector<1x1x2x288xf32> to vector<2x288xf32>
    %18 = tpu.concatenate %11, %13, %15, %17 in 0 : vector<2x288xf32>, vector<2x288xf32>, vector<2x288xf32>, vector<2x288xf32> -> vector<8x288xf32>
    %c8 = arith.constant 8 : index
    %c0_26 = arith.constant 0 : index
    %19 = vector.load %arg6[%c8, %c0_26] : memref<18x288xf32, #tpu.memory_space<vmem>>, vector<8x288xf32>
    tpu.vector_store %arg6[%c8, %c0_26], %18 {strides = array<i32>} : memref<18x288xf32, #tpu.memory_space<vmem>>, vector<8x288xf32>,
    %c0_27 = arith.constant 0 : index
    %c0_28 = arith.constant 0 : index
    %c0_29 = arith.constant 0 : index
    %c38 = arith.constant 38 : index
    %20 = vector.load %arg4[%c0_27, %c0_28, %c0_29, %c38] : memref<1x1x2x326xf32, #tpu.memory_space<vmem>>, vector<1x1x2x288xf32>
    %21 = vector.shape_cast %20 : vector<1x1x2x288xf32> to vector<2x288xf32>
    %c16 = arith.constant 16 : index
    %c0_30 = arith.constant 0 : index
    %22 = vector.load %arg6[%c16, %c0_30] : memref<18x288xf32, #tpu.memory_space<vmem>>, vector<2x288xf32>
    tpu.vector_store %arg6[%c16, %c0_30], %21 {strides = array<i32>} : memref<18x288xf32, #tpu.memory_space<vmem>>, vector<2x288xf32>,
    %c0_31 = arith.constant 0 : index
    %c0_32 = arith.constant 0 : index
    %23 = vector.load %arg2[%c0_31, %c0_32] : memref<4x18xf32, #tpu.memory_space<vmem>>, vector<4x18xf32>
    %c0_33 = arith.constant 0 : index
    %c0_34 = arith.constant 0 : index
    %24 = vector.load %arg6[%c0_33, %c0_34] : memref<18x288xf32, #tpu.memory_space<vmem>>, vector<18x288xf32>
    %cst = arith.constant dense<0.000000e+00> : vector<4x288xf32>
    %25 = tpu.matmul %23, %24, %cst {dimension_numbers = #tpu.dot_dimension_numbers<[1], [0], [0], [1], [0, 0, 1, 1], [], []>} : vector<4x18xf32>, vector<18x288xf32>, vector<4x288xf32> -> vector<4x288xf32>
    %c0_35 = arith.constant 0 : index
    %c0_36 = arith.constant 0 : index
    %26 = vector.load %arg3[%c0_35, %c0_36] : memref<4x1xf32, #tpu.memory_space<vmem>>, vector<4x1xf32>
    %27 = vector.broadcast %26 : vector<4x1xf32> to vector<4x288xf32>
    %28 = arith.addf %25, %27 : vector<4x288xf32>
    %c0_37 = arith.constant 0 : index
    %c0_38 = arith.constant 0 : index
    %c0_39 = arith.constant 0 : index
    %c0_40 = arith.constant 0 : index
    %29 = vector.load %arg5[%c0_37, %c0_38, %c0_39, %c0_40] : memref<1x1x4x288xf32, #tpu.memory_space<vmem>>, vector<1x1x4x288xf32>
    %30 = vector.shape_cast %29 : vector<1x1x4x288xf32> to vector<4x288xf32>
    %31 = vector.shape_cast %28 : vector<4x288xf32> to vector<1x1x4x288xf32>
    tpu.vector_store %arg5[%c0_37, %c0_38, %c0_39, %c0_40], %31 {strides = array<i32>} : memref<1x1x4x288xf32, #tpu.memory_space<vmem>>, vector<1x1x4x288xf32>,
    return
  }
  func.func @transform_0(%arg0: i32, %arg1: i32) -> (i32, i32) {
    %c0_i32 = arith.constant 0 : i32
    %c0_i32_0 = arith.constant 0 : i32
    %c0_i32_1 = arith.constant 0 : i32
    return %c0_i32, %c0_i32_0 : i32, i32
  }
  func.func @transform_1(%arg0: i32, %arg1: i32) -> (i32, i32) {
    %c0_i32 = arith.constant 0 : i32
    %c0_i32_0 = arith.constant 0 : i32
    %c0_i32_1 = arith.constant 0 : i32
    return %c0_i32, %c0_i32_0 : i32, i32
  }
  func.func @transform_2(%arg0: i32, %arg1: i32) -> (i32, i32, i32, i32) {
    %c0_i32 = arith.constant 0 : i32
    %c0_i32_0 = arith.constant 0 : i32
    %c0_i32_1 = arith.constant 0 : i32
    return %arg0, %arg1, %c0_i32, %c0_i32_0 : i32, i32, i32, i32
  }
  func.func @transform_3(%arg0: i32, %arg1: i32) -> (i32, i32, i32, i32) {
    %c0_i32 = arith.constant 0 : i32
    %c0_i32_0 = arith.constant 0 : i32
    %c0_i32_1 = arith.constant 0 : i32
    return %arg0, %arg1, %c0_i32, %c0_i32_0 : i32, i32, i32, i32
  }
}

</mosaic_0001>

<llo_original>
// kernel: tpu_custom_call.1
$region0: #{tpu_custom_call.1}
  #allocation0 [shape = 'u32[]', space=smem, size = 0x4, offset = 0x4, fixed_abs, tag = 'smem constant byte address 0x4 - core index']
  #allocation1 [shape = 'u32[144,128]{1,0:T(1,128)}', space=vmem, size = 0x12000, scoped, tag = 'internal scratch']
  #allocation2 [shape = 'f32[18,288]{1,0:T(8,128)}', space=vmem, size = 0x9000, scoped, tag = 'scratch operand']
  %s0 = inlined_call_operand.vmem [shape: f32[4,18], index: 0, kind: input, shape index: {}]
  %s1 = inlined_call_operand.vmem [shape: f32[4,1], index: 1, kind: input, shape index: {}]
  %s2 = inlined_call_operand.hbm [shape: f32[2,1,2,326], index: 2, kind: input, shape index: {}]
  %s3 = inlined_call_operand.hbm [shape: f32[2,1,4,288], index: 3, kind: output, shape index: {}]
  %s4 = sld [smem:[#allocation0]]
  $region49: #{tpu_custom_call.1} parent=0
    _
  %s6 = ssub.s32 1, %s4
  %s7 = scalar_select 0, %s6, %s4
  $region1: #{tpu_custom_call.1} parent=0
    #allocation3 [shape = 'u8[6144]{0}', space=vmem, size = 0x1800, scoped, tag = 'input window, operand 2']
    #allocation4 [shape = 's32[2]{0}', space=sflag, size = 0x8, scoped, tag = 'scoped memory for tpu_custom_call.1']
    #allocation5 [shape = 's32[2]{0}', space=sflag, size = 0x8, scoped, tag = 'scoped memory for tpu_custom_call.1']
    #allocation6 [shape = 'u8[12288]{0}', space=vmem, size = 0x3000, scoped, tag = 'output window, operand 0']
    %8 = vsyncpa [#allocation4], 0
    %s9 = scalar_lea.sflag [#allocation4], 1
    %10 = vsyncpa %s9, 0
    %11 = vsyncpa [#allocation5], 0
    %s12 = scalar_lea.sflag [#allocation5], 1
    %13 = vsyncpa %s12, 0
    loop: start=0, step=1, limit=4
    $region2: #{tpu_custom_call.1} parent=1 // loop_pre_header
      _
    $region3: #{tpu_custom_call.1} parent=1 // loop_header
      %s15 = sphi 0, %s19
      %p16 = scmp.ge.s32.totalorder %s15, 4
      %s22 = sphi 0, %s34
      %s23 = sphi 0, %s30
      %s24 = sphi 0, %s22
      %s25 = sphi 0, %s23
      %s26 = sphi 0, %s24
      %s27 = sphi 0, %s25
      %s35 = sphi 0, %s35
      %s37 = sphi 0, %s35
      %s38 = sphi 0, %s37
      %s52 = sphi 0, %s38
      %s56 = sphi 0, %s56
      %s58 = sphi 0, %s56
      %s59 = sphi 0, %s58
      %s73 = sphi 0, %s59
      %s81 = sphi 0, %s83
      %s84 = sphi 0, %s81
      %s85 = sphi 0, %s84
      %s101 = sphi 0, %s85
      %s109 = sphi 0, %s111
      %s112 = sphi 0, %s109
      %s113 = sphi 0, %s112
      %s129 = sphi 0, %s113
    $region4: #{tpu_custom_call.1} parent=1 // loop_header_branch
      %18 = sbr.rel (%p16) target = $region8
    $region5: #{tpu_custom_call.1} parent=1 // loop_body
      %s20 = ssub.s32 %s15, 1
      %s21 = ssub.s32 %s15, 2
      %s28 = sadd.s32 1, %s23
      %p29 = scmp.ge.s32.totalorder %s28, 1
      %s30 = scalar_select %p29, 0, %s28
      %s31 = sadd.s32 1, %s22
      %s32 = scalar_select %p29, %s31, %s22
      %p33 = scmp.ge.s32.totalorder %s32, 2
      %s34 = scalar_select %p33, 0, %s32
      %s36 = sadd.s32 %s35, 1
      %p39 = scmp.eq.s32.totalorder %s15, 1
      %p40 = scmp.ne.s32.totalorder %s35, %s37
      %p41 = scmp.eq.s32.totalorder %s15, 0
      %p42 = por %p40, %p41
      %p43 = scmp.ne.s32.totalorder %s35, %s37
      %p44 = scmp.eq.s32.totalorder %s20, 1
      %p45 = por %p43, %p44
      %p46 = scmp.ne.s32.totalorder %s37, %s38
      %p47 = scmp.eq.s32.totalorder %s20, 0
      %p48 = por %p46, %p47
      %p49 = scmp.ne.s32.totalorder %s37, %s38
      %p50 = scmp.eq.s32.totalorder %s21, 1
      %p51 = por %p49, %p50
      %p53 = scmp.ne.s32.totalorder %s38, %s52
      %p54 = scmp.eq.s32.totalorder %s21, 0
      %p55 = por %p53, %p54
      %s57 = sadd.s32 %s56, 1
      %p60 = scmp.eq.s32.totalorder %s15, 1
      %p61 = scmp.ne.s32.totalorder %s56, %s58
      %p62 = scmp.eq.s32.totalorder %s15, 0
      %p63 = por %p61, %p62
      %p64 = scmp.ne.s32.totalorder %s56, %s58
      %p65 = scmp.eq.s32.totalorder %s20, 1
      %p66 = por %p64, %p65
      %p67 = scmp.ne.s32.totalorder %s58, %s59
      %p68 = scmp.eq.s32.totalorder %s20, 0
      %p69 = por %p67, %p68
      %p70 = scmp.ne.s32.totalorder %s58, %s59
      %p71 = scmp.eq.s32.totalorder %s21, 1
      %p72 = por %p70, %p71
      %p74 = scmp.ne.s32.totalorder %s59, %s73
      %p75 = scmp.eq.s32.totalorder %s21, 0
      %p76 = por %p74, %p75
      %s77 = ssub.s32 %s22, %s34
      %s78 = ssub.s32 %s23, %s30
      %s79 = sor.u32 %s77, %s78
      %p80 = scmp.eq.s32.totalorder %s79, 0
      %s82 = sadd.s32 %s81, 1
      %s83 = scalar_select %p80, %s81, %s82
      %p86 = pneg %p80
      %p87 = scmp.eq.s32.totalorder %s15, 1
      %p88 = por %p86, %p87
      %p89 = scmp.ne.s32.totalorder %s81, %s84
      %p90 = scmp.eq.s32.totalorder %s15, 0
      %p91 = por %p89, %p90
      %p92 = scmp.ne.s32.totalorder %s81, %s84
      %p93 = scmp.eq.s32.totalorder %s20, 1
      %p94 = por %p92, %p93
      %p95 = scmp.ne.s32.totalorder %s84, %s85
      %p96 = scmp.eq.s32.totalorder %s20, 0
      %p97 = por %p95, %p96
      %p98 = scmp.ne.s32.totalorder %s84, %s85
      %p99 = scmp.eq.s32.totalorder %s21, 1
      %p100 = por %p98, %p99
      %p102 = scmp.ne.s32.totalorder %s85, %s101
      %p103 = scmp.eq.s32.totalorder %s21, 0
      %p104 = por %p102, %p103
      %s105 = ssub.s32 %s22, %s34
      %s106 = ssub.s32 %s23, %s30
      %s107 = sor.u32 %s105, %s106
      %p108 = scmp.eq.s32.totalorder %s107, 0
      %s110 = sadd.s32 %s109, 1
      %s111 = scalar_select %p108, %s109, %s110
      %p114 = pneg %p108
      %p115 = scmp.eq.s32.totalorder %s15, 1
      %p116 = por %p114, %p115
      %p117 = scmp.ne.s32.totalorder %s109, %s112
      %p118 = scmp.eq.s32.totalorder %s15, 0
      %p119 = por %p117, %p118
      %p120 = scmp.ne.s32.totalorder %s109, %s112
      %p121 = scmp.eq.s32.totalorder %s20, 1
      %p122 = por %p120, %p121
      %p123 = scmp.ne.s32.totalorder %s112, %s113
      %p124 = scmp.eq.s32.totalorder %s20, 0
      %p125 = por %p123, %p124
      %p126 = scmp.ne.s32.totalorder %s112, %s113
      %p127 = scmp.eq.s32.totalorder %s21, 1
      %p128 = por %p126, %p127
      %p130 = scmp.ne.s32.totalorder %s113, %s129
      %p131 = scmp.eq.s32.totalorder %s21, 0
      %p132 = por %p130, %p131
      %p133 = scmp.le.s32.totalorder 1, %s15
      %p134 = scmp.lt.s32.totalorder %s15, 3
      %p135 = pnand %p133, %p134
      %p136 = pneg %p135
      // Predicated region
      $region9: #{tpu_custom_call.1} parent=5 // pred_check
        _
      $region10: #{tpu_custom_call.1} parent=5 // pred_check_branch
        %138 = sbr.rel (%p135) target = $region12
      $region11: #{tpu_custom_call.1} parent=5 // pred_region
        %s139 = ssub.s32 %s15, 1
        // Predicated region
        $region13: #{tpu_custom_call.1} parent=11 // pred_check
          %p140 = pneg %p48
        $region14: #{tpu_custom_call.1} parent=11 // pred_check_branch
          %142 = sbr.rel (%p140) target = $region16
        $region15: #{tpu_custom_call.1} parent=11 // pred_region
          _
        $region16: #{tpu_custom_call.1} parent=11 // pred_fallthru
          _
        // Predicated region
        $region17: #{tpu_custom_call.1} parent=11 // pred_check
          %p143 = pneg %p69
        $region18: #{tpu_custom_call.1} parent=11 // pred_check_branch
          %145 = sbr.rel (%p143) target = $region20
        $region19: #{tpu_custom_call.1} parent=11 // pred_region
          _
        $region20: #{tpu_custom_call.1} parent=11 // pred_fallthru
          _
      $region12: #{tpu_custom_call.1} parent=5 // pred_fallthru
        _
      %p146 = scmp.lt.s32.totalorder %s15, 2
      // Predicated region
      $region21: #{tpu_custom_call.1} parent=5 // pred_check
        %p147 = pneg %p146
      $region22: #{tpu_custom_call.1} parent=5 // pred_check_branch
        %149 = sbr.rel (%p147) target = $region24
      $region23: #{tpu_custom_call.1} parent=5 // pred_region
        // Predicated region
        $region25: #{tpu_custom_call.1} parent=23 // pred_check
          %p150 = pneg %p91
        $region26: #{tpu_custom_call.1} parent=23 // pred_check_branch
          %152 = sbr.rel (%p150) target = $region28
        $region27: #{tpu_custom_call.1} parent=23 // pred_region
          %s153 = sand.u32 %s81, 1
          %s154 = scalar_lea.sflag [#allocation4], %s153
          %s155 = sand.u32 %s81, 1
          %s156 = smul.addr %s155, 6
          %s157 = scalar_lea.vmem [#allocation3], %s156
          %s159 = ssub.s32 96, 96
          %160 = vsyncadd %s154, %s159
          %s161 = smul.addr %s23, 3
          %s162 = smul.addr %s22, 3
          %s163 = sadd.s32 %s161, %s162
          %s164 = smul.addr %s163, 32
          %s165 = scalar_lea.hbm %s2, %s164
          %s167 = sshll.u32 %s157, 4
          %s168 = int_to_ptr.vmem [resolvable:$true] %s167
          %170 = dma.hbm_to_vmem [thread:$0]  %s165, 96, %s168, %s154
        $region28: #{tpu_custom_call.1} parent=23 // pred_fallthru
          _
      $region24: #{tpu_custom_call.1} parent=5 // pred_fallthru
        _
      %p171 = scmp.le.s32.totalorder 1, %s15
      %p172 = scmp.lt.s32.totalorder %s15, 3
      %p173 = pnand %p171, %p172
      %p174 = pneg %p173
      // Predicated region
      $region29: #{tpu_custom_call.1} parent=5 // pred_check
        _
      $region30: #{tpu_custom_call.1} parent=5 // pred_check_branch
        %176 = sbr.rel (%p173) target = $region32
      $region31: #{tpu_custom_call.1} parent=5 // pred_region
        %s177 = ssub.s32 %s15, 1
        %s178 = sand.u32 %s84, 1
        %s179 = scalar_lea.sflag [#allocation4], %s178
        %s180 = sand.u32 %s84, 1
        %s181 = smul.addr %s180, 6
        %s182 = scalar_lea.vmem [#allocation3], %s181
        // Predicated region
        $region33: #{tpu_custom_call.1} parent=31 // pred_check
          %p183 = pneg %p97
        $region34: #{tpu_custom_call.1} parent=31 // pred_check_branch
          %185 = sbr.rel (%p183) target = $region36
        $region35: #{tpu_custom_call.1} parent=31 // pred_region
          %186 = dma.done %s179, 96
        $region36: #{tpu_custom_call.1} parent=31 // pred_fallthru
          _
        %p187 = pneg %p48
        %p188 = pneg %p45
        %p189 = pneg %p69
        %p190 = pneg %p66
        %s191 = sand.u32 %s84, 1
        %s192 = scalar_lea.sflag [#allocation4], %s191
        %s193 = sand.u32 %s84, 1
        %s194 = smul.addr %s193, 6
        %s195 = scalar_lea.vmem [#allocation3], %s194
        %p196 = pneg %p97
        %p197 = pneg %p94
        %p198 = pneg %p125
        %p199 = pneg %p122
        %s200 = sand.u32 %s112, 1
        %s201 = scalar_lea.sflag [#allocation5], %s200
        %s202 = sand.u32 %s112, 1
        %s203 = smul.addr %s202, 12
        %s204 = scalar_lea.vmem [#allocation6], %s203
        %v205 = vld [vmem:[%s182] sm:$0x3f]
        %v207 = vcombine.high %v205, %v205
        %v209 = vunpack.c.l.s4 1983009808
        %v210 = vunpack.c.0.s8 %v209
        %v211 = vlaneseq
        %v212 = vshrl.u32 %v211, 7
        %v213 = vsub.s32 %v210, %v212
        %v214 = vrot.slane %v205, %v213
        %v216 = vunpack.c.l.s4 1983009808
        %v217 = vunpack.c.0.s8 %v216
        %v218 = vlaneseq
        %v219 = vshrl.u32 %v218, 7
        %v220 = vsub.s32 %v217, %v219
        %v221 = vrot.slane %v207, %v220
        %v222 = vcombine.high %v214, %v214
        %v226 = vcombine.low %v205, %v205
        %v228 = vunpack.c.l.s4 1983009808
        %v229 = vunpack.c.0.s8 %v228
        %v230 = vlaneseq
        %v231 = vshrl.u32 %v230, 7
        %v232 = vsub.s32 %v229, %v231
        %v233 = vrot.slane %v226, %v232
        %v234 = vcombine.high %v233, %v233
        %235 = vrot.lane.b32.xlu0 %v233, 127
        %v236 = vpop.permute.xlu0 %235
        %237 = vrot.lane.b32.xlu0 %v234, 127
        %v238 = vpop.permute.xlu0 %237
        %239 = vrot.lane.b32.xlu0 %v214, 127
        %v240 = vpop.permute.xlu0 %239
        %vm241 = vcmask 1039360
        %v242 = vsel %vm241, %v236, %v238
        %v243 = vsel %vm241, %v238, %v240
        %v247 = vcombine.low %v214, %v214
        %v248 = vcombine.low %v221, %v221
        %249 = vrot.lane.b32.xlu0 %v247, 126
        %v250 = vpop.permute.xlu0 %249
        %251 = vrot.lane.b32.xlu0 %v214, 126
        %v252 = vpop.permute.xlu0 %251
        %253 = vrot.lane.b32.xlu0 %v248, 126
        %v254 = vpop.permute.xlu0 %253
        %vm255 = vcmask 1031168
        %v256 = vsel %vm255, %v250, %v252
        %v257 = vsel %vm255, %v252, %v254
        %v261 = vcombine.low %v233, %v233
        %262 = vrot.lane.b32.xlu0 %v261, 110
        %v263 = vpop.permute.xlu0 %262
        %264 = vrot.lane.b32.xlu0 %v233, 110
        %v265 = vpop.permute.xlu0 %264
        %266 = vrot.lane.b32.xlu0 %v247, 110
        %v267 = vpop.permute.xlu0 %266
        %vm268 = vcmask 900096
        %v269 = vsel %vm268, %v263, %v265
        %v270 = vsel %vm268, %v265, %v267
        %vm274 = vcmask 1041408
        %v275 = vsel %vm274, %v214, %v242
        %v276 = vsel %vm274, %v222, %v243
        %v277 = vsel %vm274, %v221, %v240
        %vm278 = vcmask 1043456
        %v279 = vsel %vm278, %v275, %v256
        %v280 = vsel %vm278, %v276, %v257
        %v281 = vsel %vm278, %v277, %v254
        %vm282 = vcmask 1045504
        %v283 = vsel %vm282, %v279, %v269
        %v284 = vsel %vm282, %v280, %v270
        %v285 = vsel %vm282, %v281, %v267
        %286 = vst [vmem:[#allocation2] sm:$0xff] %v283
        %287 = vst [vmem:[#allocation2 + $0x8] sm:$0xff] %v284
        %vm288 = vcmask 261120
        %289 = vst.msk [vmem:[#allocation2 + $0x10] sm:$0xff] %vm288, %v285
        %v290 = vld [vmem:[%s182] sm:$0x3f]
        %v292 = vcombine.high %v290, %v290
        %v294 = vunpack.c.l.s4 1983009808
        %v295 = vunpack.c.0.s8 %v294
        %v296 = vlaneseq
        %v297 = vshrl.u32 %v296, 7
        %v298 = vsub.s32 %v295, %v297
        %v299 = vrot.slane %v290, %v298
        %v301 = vunpack.c.l.s4 1983009808
        %v302 = vunpack.c.0.s8 %v301
        %v303 = vlaneseq
        %v304 = vshrl.u32 %v303, 7
        %v305 = vsub.s32 %v302, %v304
        %v306 = vrot.slane %v292, %v305
        %v307 = vcombine.high %v299, %v299
        %v311 = vcombine.low %v290, %v290
        %v313 = vunpack.c.l.s4 1983009808
        %v314 = vunpack.c.0.s8 %v313
        %v315 = vlaneseq
        %v316 = vshrl.u32 %v315, 7
        %v317 = vsub.s32 %v314, %v316
        %v318 = vrot.slane %v311, %v317
        %v319 = vcombine.high %v318, %v318
        %320 = vrot.lane.b32.xlu0 %v318, 127
        %v321 = vpop.permute.xlu0 %320
        %322 = vrot.lane.b32.xlu0 %v319, 127
        %v323 = vpop.permute.xlu0 %322
        %324 = vrot.lane.b32.xlu0 %v299, 127
        %v325 = vpop.permute.xlu0 %324
        %v326 = vsel %vm241, %v321, %v323
        %v327 = vsel %vm241, %v323, %v325
        %v331 = vcombine.low %v299, %v299
        %v332 = vcombine.low %v306, %v306
        %333 = vrot.lane.b32.xlu0 %v331, 111
        %v334 = vpop.permute.xlu0 %333
        %335 = vrot.lane.b32.xlu0 %v299, 111
        %v336 = vpop.permute.xlu0 %335
        %337 = vrot.lane.b32.xlu0 %v332, 111
        %v338 = vpop.permute.xlu0 %337
        %vm339 = vcmask 908288
        %v340 = vsel %vm339, %v334, %v336
        %v341 = vsel %vm339, %v336, %v338
        %v345 = vcombine.low %v318, %v318
        %346 = vrot.lane.b32.xlu0 %v345, 110
        %v347 = vpop.permute.xlu0 %346
        %348 = vrot.lane.b32.xlu0 %v318, 110
        %v349 = vpop.permute.xlu0 %348
        %350 = vrot.lane.b32.xlu0 %v331, 110
        %v351 = vpop.permute.xlu0 %350
        %v352 = vsel %vm268, %v347, %v349
        %v353 = vsel %vm268, %v349, %v351
        %v357 = vsel %vm274, %v299, %v326
        %v358 = vsel %vm274, %v307, %v327
        %v359 = vsel %vm274, %v306, %v325
        %v360 = vsel %vm278, %v357, %v340
        %v361 = vsel %vm278, %v358, %v341
        %v362 = vsel %vm278, %v359, %v338
        %v363 = vsel %vm282, %v360, %v352
        %v364 = vsel %vm282, %v361, %v353
        %v365 = vsel %vm282, %v362, %v351
        %369 = vrot.lane.b32.xlu0 %v363, 109
        %v370 = vpop.permute.xlu0 %369
        %371 = vrot.lane.b32.xlu0 %v364, 109
        %v372 = vpop.permute.xlu0 %371
        %373 = vrot.lane.b32.xlu0 %v365, 109
        %v374 = vpop.permute.xlu0 %373
        %vm375 = vcmask 891904
        %v376 = vsel %vm375, %v370, %v372
        %v377 = vsel %vm375, %v372, %v374
        %381 = vst [vmem:[#allocation2 + $0x18] sm:$0xff] %v376
        %382 = vst [vmem:[#allocation2 + $0x20] sm:$0xff] %v377
        %383 = vst.msk [vmem:[#allocation2 + $0x28] sm:$0xff] %vm288, %v374
        %v384 = vld [vmem:[%s182] sm:$0x3f]
        %v386 = vcombine.high %v384, %v384
        %v388 = vunpack.c.l.s4 1983009808
        %v389 = vunpack.c.0.s8 %v388
        %v390 = vlaneseq
        %v391 = vshrl.u32 %v390, 7
        %v392 = vsub.s32 %v389, %v391
        %v393 = vrot.slane %v384, %v392
        %v395 = vunpack.c.l.s4 1983009808
        %v396 = vunpack.c.0.s8 %v395
        %v397 = vlaneseq
        %v398 = vshrl.u32 %v397, 7
        %v399 = vsub.s32 %v396, %v398
        %v400 = vrot.slane %v386, %v399
        %v401 = vcombine.high %v393, %v393
        %402 = vrot.lane.b32.xlu0 %v393, 90
        %v403 = vpop.permute.xlu0 %402
        %404 = vrot.lane.b32.xlu0 %v401, 90
        %v405 = vpop.permute.xlu0 %404
        %406 = vrot.lane.b32.xlu0 %v400, 90
        %v407 = vpop.permute.xlu0 %406
        %vm408 = vcmask 736256
        %v409 = vsel %vm408, %v403, %v405
        %v410 = vsel %vm408, %v405, %v407
        %414 = vst [vmem:[#allocation2 + $0x30] sm:$0x3] %v409
        %415 = vst [vmem:[#allocation2 + $0x38] sm:$0x3] %v410
        %vm416 = vcmask 254976
        %417 = vst.msk [vmem:[#allocation2 + $0x40] sm:$0x3] %vm416, %v407
        %v418 = vld [vmem:[%s0] sm:$0xf]
        %v419 = vld [vmem:[#allocation2] sm:$0xff]
        %v420 = vld [vmem:[#allocation2 + $0x8] sm:$0xff]
        %v421 = vld [vmem:[#allocation2 + $0x10] sm:$0xff]
        %v422 = vld [vmem:[#allocation2 + $0x18] sm:$0xff]
        %v423 = vld [vmem:[#allocation2 + $0x20] sm:$0xff]
        %v424 = vld [vmem:[#allocation2 + $0x28] sm:$0xff]
        %v425 = vld [vmem:[#allocation2 + $0x30] sm:$0x3]
        %v426 = vld [vmem:[#allocation2 + $0x38] sm:$0x3]
        %v427 = vld [vmem:[#allocation2 + $0x40] sm:$0x3]
        %v428 = vld [vmem:[%s1] sm:$0xf]
        %430 = vset.pattern.permute.xlu0 0
        %431 = vperm.xlu0 %430, %v428
        %v432 = vpop.permute.xlu0 %431
        %vm434 = vcmask 146432
        %v436 = vsel %vm434, %v418, 0
        %v439 = vsel %vm274, %v425, 0
        %v442 = vsel %vm274, %v426, 0
        %v445 = vsel %vm274, %v427, 0
        %447 = vmatprep.subr.mxu0 0.0
        %448 = vmatpush1.msra.mxu0 0.0
        %449 = vmatprep.subr.mxu0 0.0
        %450 = vmatpush1.msra.mxu0 0.0
        %451 = vmatprep.subr.mxu0 0.0
        %452 = vmatpush1.msra.mxu0 0.0
        %453 = vmatprep.subr.mxu0 0.0
        %454 = vmatpush1.msra.mxu0 0.0
        %455 = vmatprep.subr.mxu0 0.0
        %456 = vmatpush1.msra.mxu0 0.0
        %457 = vmatprep.subr.mxu0 0.0
        %458 = vmatpush1.msra.mxu0 0.0
        %459 = vmatprep.subr.mxu0 0.0
        %460 = vmatpush1.msra.mxu0 0.0
        %461 = vmatprep.subr.mxu0 0.0
        %462 = vmatpush1.msra.mxu0 0.0
        %463 = vmatprep.subr.mxu0 0.0
        %464 = vmatpush1.msra.mxu0 0.0
        %465 = vmatprep.subr.mxu0 0.0
        %466 = vmatpush1.msra.mxu0 0.0
        %467 = vmatprep.subr.mxu0 0.0
        %468 = vmatpush1.msra.mxu0 0.0
        %469 = vmatprep.subr.mxu0 0.0
        %470 = vmatpush1.msra.mxu0 0.0
        %471 = vmatprep.subr.mxu0 0.0
        %472 = vmatpush1.msra.mxu0 0.0
        %473 = vmatprep.subr.mxu0 %v442
        %474 = vmatpush1.msra.mxu0 %v439
        %475 = vmatprep.subr.mxu0 %v423
        %476 = vmatpush1.msra.mxu0 %v422
        %477 = vmatprep.subr.mxu0 %v420
        %478 = vmatpush1.msra.mxu0 %v419
        %479 = vmatprep.subr.mxu0 0.0
        %480 = vmatpush2.msra.mxu0 0.0
        %481 = vmatprep.subr.mxu0 0.0
        %482 = vmatpush2.msra.mxu0 0.0
        %483 = vmatprep.subr.mxu0 0.0
        %484 = vmatpush2.msra.mxu0 0.0
        %485 = vmatprep.subr.mxu0 0.0
        %486 = vmatpush2.msra.mxu0 0.0
        %487 = vmatprep.subr.mxu0 0.0
        %488 = vmatpush2.msra.mxu0 0.0
        %489 = vmatprep.subr.mxu0 0.0
        %490 = vmatpush2.msra.mxu0 0.0
        %491 = vmatprep.subr.mxu0 0.0
        %492 = vmatpush2.msra.mxu0 0.0
        %493 = vmatprep.subr.mxu0 0.0
        %494 = vmatpush2.msra.mxu0 0.0
        %495 = vmatprep.subr.mxu0 0.0
        %496 = vmatpush2.msra.mxu0 0.0
        %497 = vmatprep.subr.mxu0 0.0
        %498 = vmatpush2.msra.mxu0 0.0
        %499 = vmatprep.subr.mxu0 0.0
        %500 = vmatpush2.msra.mxu0 0.0
        %501 = vmatprep.subr.mxu0 0.0
        %502 = vmatpush2.msra.mxu0 0.0
        %503 = vmatprep.subr.mxu0 0.0
        %504 = vmatpush2.msra.mxu0 0.0
        %505 = vmatprep.subr.mxu0 0.0
        %506 = vmatpush2.msra.mxu0 0.0
        %507 = vmatprep.subr.mxu0 0.0
        %508 = vmatpush2.msra.mxu0 0.0
        %509 = vmatprep.subr.mxu0 0.0
        %510 = vmatpush2.msra.mxu0 0.0
        %511 = vmatprep.mubr.f32.mxu0 0.0
        %512 = vmatmul.mubr.f32.gmra.mxu0 %v436
        %v513 = vpop.f32.mrf.mxu0
        %v514 = vadd.f32 %v432, %v513
        %v515 = vpop.f32.mrf.mxu0
        %v516 = vadd.f32 %v432, %v515
        %517 = vdwg.mxu0
        %518 = vmatprep.subr.mxu0 0.0
        %519 = vmatpush1.msra.mxu0 0.0
        %520 = vmatprep.subr.mxu0 0.0
        %521 = vmatpush1.msra.mxu0 0.0
        %522 = vmatprep.subr.mxu0 0.0
        %523 = vmatpush1.msra.mxu0 0.0
        %524 = vmatprep.subr.mxu0 0.0
        %525 = vmatpush1.msra.mxu0 0.0
        %526 = vmatprep.subr.mxu0 0.0
        %527 = vmatpush1.msra.mxu0 0.0
        %528 = vmatprep.subr.mxu0 0.0
        %529 = vmatpush1.msra.mxu0 0.0
        %530 = vmatprep.subr.mxu0 0.0
        %531 = vmatpush1.msra.mxu0 0.0
        %532 = vmatprep.subr.mxu0 0.0
        %533 = vmatpush1.msra.mxu0 0.0
        %534 = vmatprep.subr.mxu0 0.0
        %535 = vmatpush1.msra.mxu0 0.0
        %536 = vmatprep.subr.mxu0 0.0
        %537 = vmatpush1.msra.mxu0 0.0
        %538 = vmatprep.subr.mxu0 0.0
        %539 = vmatpush1.msra.mxu0 0.0
        %540 = vmatprep.subr.mxu0 0.0
        %541 = vmatpush1.msra.mxu0 0.0
        %542 = vmatprep.subr.mxu0 0.0
        %543 = vmatpush1.msra.mxu0 0.0
        %544 = vmatprep.subr.mxu0 0.0
        %545 = vmatpush1.msra.mxu0 %v445
        %546 = vmatprep.subr.mxu0 0.0
        %547 = vmatpush1.msra.mxu0 %v424
        %548 = vmatprep.subr.mxu0 0.0
        %549 = vmatpush1.msra.mxu0 %v421
        %550 = vmatprep.subr.mxu0 0.0
        %551 = vmatpush2.msra.mxu0 0.0
        %552 = vmatprep.subr.mxu0 0.0
        %553 = vmatpush2.msra.mxu0 0.0
        %554 = vmatprep.subr.mxu0 0.0
        %555 = vmatpush2.msra.mxu0 0.0
        %556 = vmatprep.subr.mxu0 0.0
        %557 = vmatpush2.msra.mxu0 0.0
        %558 = vmatprep.subr.mxu0 0.0
        %559 = vmatpush2.msra.mxu0 0.0
        %560 = vmatprep.subr.mxu0 0.0
        %561 = vmatpush2.msra.mxu0 0.0
        %562 = vmatprep.subr.mxu0 0.0
        %563 = vmatpush2.msra.mxu0 0.0
        %564 = vmatprep.subr.mxu0 0.0
        %565 = vmatpush2.msra.mxu0 0.0
        %566 = vmatprep.subr.mxu0 0.0
        %567 = vmatpush2.msra.mxu0 0.0
        %568 = vmatprep.subr.mxu0 0.0
        %569 = vmatpush2.msra.mxu0 0.0
        %570 = vmatprep.subr.mxu0 0.0
        %571 = vmatpush2.msra.mxu0 0.0
        %572 = vmatprep.subr.mxu0 0.0
        %573 = vmatpush2.msra.mxu0 0.0
        %574 = vmatprep.subr.mxu0 0.0
        %575 = vmatpush2.msra.mxu0 0.0
        %576 = vmatprep.subr.mxu0 0.0
        %577 = vmatpush2.msra.mxu0 0.0
        %578 = vmatprep.subr.mxu0 0.0
        %579 = vmatpush2.msra.mxu0 0.0
        %580 = vmatprep.subr.mxu0 0.0
        %581 = vmatpush2.msra.mxu0 0.0
        %582 = vmatprep.mubr.f32.mxu0 0.0
        %583 = vmatmul.mubr.f32.gmra.mxu0 %v436
        %v584 = vpop.f32.mrf.mxu0
        %v585 = vadd.f32 %v432, %v584
        %v586 = vpop.f32.mrf.mxu0
        %587 = vdwg.mxu0
        %v590 = vcombine.low %v514, %v516
        %592 = vst [vmem:[%s204] sm:$0xff] %v590
        %vm593 = vcmask 257024
        %594 = vst.msk [vmem:[%s204 + $0x8] sm:$0xf] %vm593, %v585
        %s595 = sand.u32 %s112, 1
        %s596 = scalar_lea.sflag [#allocation5], %s595
        %s597 = sand.u32 %s112, 1
        %s598 = smul.addr %s597, 12
        %s599 = scalar_lea.vmem [#allocation6], %s598
        // Predicated region
        $region37: #{tpu_custom_call.1} parent=31 // pred_check
          %p600 = pneg %p122
        $region38: #{tpu_custom_call.1} parent=31 // pred_check_branch
          %602 = sbr.rel (%p600) target = $region40
        $region39: #{tpu_custom_call.1} parent=31 // pred_region
          %s604 = ssub.s32 192, 192
          %605 = vsyncadd %s596, %s604
          %s606 = smul.addr %s25, 3
          %s607 = smul.addr %s24, 3
          %s608 = sadd.s32 %s606, %s607
          %s609 = smul.addr %s608, 64
          %s610 = scalar_lea.hbm %s3, %s609
          %s612 = sshll.u32 %s599, 4
          %s613 = int_to_ptr.vmem [resolvable:$true] %s612
          %615 = dma.vmem_to_hbm [thread:$0]  %s613, 192, %s610, %s596
        $region40: #{tpu_custom_call.1} parent=31 // pred_fallthru
          _
      $region32: #{tpu_custom_call.1} parent=5 // pred_fallthru
        _
      %p616 = scmp.le.s32.totalorder 2, %s15
      // Predicated region
      $region41: #{tpu_custom_call.1} parent=5 // pred_check
        %p617 = pneg %p616
      $region42: #{tpu_custom_call.1} parent=5 // pred_check_branch
        %619 = sbr.rel (%p617) target = $region44
      $region43: #{tpu_custom_call.1} parent=5 // pred_region
        %s620 = ssub.s32 %s15, 2
        // Predicated region
        $region45: #{tpu_custom_call.1} parent=43 // pred_check
          %p621 = pneg %p128
        $region46: #{tpu_custom_call.1} parent=43 // pred_check_branch
          %623 = sbr.rel (%p621) target = $region48
        $region47: #{tpu_custom_call.1} parent=43 // pred_region
          %s624 = sand.u32 %s113, 1
          %s625 = scalar_lea.sflag [#allocation5], %s624
          %s626 = sand.u32 %s113, 1
          %s627 = smul.addr %s626, 12
          %s628 = scalar_lea.vmem [#allocation6], %s627
          %629 = dma.done %s625, 192
        $region48: #{tpu_custom_call.1} parent=43 // pred_fallthru
          _
      $region44: #{tpu_custom_call.1} parent=5 // pred_fallthru
        _
    $region6: #{tpu_custom_call.1} parent=1 // loop_footer
      %s19 = sadd.s32 1, %s15
    $region7: #{tpu_custom_call.1} parent=1 // loop_footer_branch
      %14 = sbr.rel target = $region3
    $region8: #{tpu_custom_call.1} parent=1 // loop_exit
      _
    %630 = vsyncpa [#allocation4], 1
    %s631 = scalar_lea.sflag [#allocation4], 1
    %632 = vsyncpa %s631, 1
    %633 = vsyncpa [#allocation5], 1
    %s634 = scalar_lea.sflag [#allocation5], 1
    %635 = vsyncpa %s634, 1

</llo_original>
